<compile_context>
chip_gen: v7x
topology: tpu7x:2x2x1
jax: 0.10.0
libtpu: 0.0.40
codegen_flags: <defaults>
</compile_context>

<pallas_src>
import jax
import jax.numpy as jnp
from jax.experimental import pallas as pl
from jax.experimental.pallas import tpu as pltpu


def _attention_kernel(enc_ref, dec_ref, weT_ref, be_ref, wdT_ref, bd_ref,
                      wf_ref, ctx_ref, alpha_ref):
    # enc_ref:  (Bt, N, E)   batch tile of encoder features
    # dec_ref:  (Bt, H)      batch tile of decoder hidden states
    # weT_ref:  (E, A)   be_ref: (1, A)
    # wdT_ref:  (H, A)   bd_ref: (1, A)
    # wf_ref:   (1, A)       (full_att bias cancels in softmax -> not passed)
    # ctx_ref:  (Bt, E), alpha_ref: (Bt, N)
    Bt, N, E = enc_ref.shape
    A = weT_ref.shape[1]

    enc = enc_ref[...]                                   # (Bt, N, E)
    dec = dec_ref[...]                                   # (Bt, H)

    # encoder_att: one big MXU matmul over all Bt*N pixel rows.
    enc2 = enc.reshape(Bt * N, E)
    att1 = jnp.dot(enc2, weT_ref[...],
                   preferred_element_type=jnp.float32) + be_ref[...]    # (Bt*N, A)

    # decoder_att: single (Bt, H) x (H, A) MXU dot for the whole tile.
    att2 = jnp.dot(dec, wdT_ref[...],
                   preferred_element_type=jnp.float32) + bd_ref[...]    # (Bt, A)

    att = jnp.tanh(att1.reshape(Bt, N, A) + att2[:, None, :])           # (Bt, N, A)

    # full_att: (A -> 1) projection done on the VPU (multiply + lane reduce)
    # instead of a degenerate 1-column MXU push.
    e = jnp.sum(att * wf_ref[...][None, :, :], axis=-1)                 # (Bt, N)

    # Softmax over the pixel axis -- lane-major, reductions over the last dim.
    m = jnp.max(e, axis=-1, keepdims=True)                              # (Bt, 1)
    p = jnp.exp(e - m)                                                  # (Bt, N)
    denom = jnp.sum(p, axis=-1, keepdims=True)                          # (Bt, 1)
    alpha = p / denom                                                   # (Bt, N)

    # context: weighted sum over pixels on the VPU (avoids a 1-row MXU dot).
    ctx = jnp.sum(enc * alpha[:, :, None], axis=1)                      # (Bt, E)

    ctx_ref[...] = ctx.astype(ctx_ref.dtype)
    alpha_ref[...] = alpha.astype(alpha_ref.dtype)


def attention_forward(encoder_out, decoder_hidden, params, block_b=8):
    """encoder_out: (B, N, E) f32; decoder_hidden: (B, H) f32."""
    B, N, E = encoder_out.shape
    H = decoder_hidden.shape[1]
    we, be, wd, bd, wf = (params["we"], params["be"], params["wd"],
                          params["bd"], params["wf"])
    A = we.shape[0]

    # Batch tiling: whole batch in one grid step when small; otherwise tiles of
    # `block_b` (multiple of 8 so the sublane dim of 2-D blocks is aligned).
    if B <= block_b:
        Bt, Bp = B, B
    else:
        Bt = max(8, (block_b // 8) * 8)
        Bp = -(-B // Bt) * Bt
    if Bp != B:
        encoder_out = jnp.pad(encoder_out, ((0, Bp - B), (0, 0), (0, 0)))
        decoder_hidden = jnp.pad(decoder_hidden, ((0, Bp - B), (0, 0)))

    # Host-side weight prep: pre-transpose so the kernel does no XLU transposes.
    weT = we.T                    # (E, A)
    wdT = wd.T                    # (H, A)
    be2 = be.reshape(1, A)
    bd2 = bd.reshape(1, A)
    wf2 = wf.reshape(1, A)
    # NOTE: the full_att bias `bf` is a no-op through the softmax -> dropped.

    grid = (Bp // Bt,)

    flops = (2 * Bp * N * E * A        # encoder_att
             + 2 * Bp * H * A          # decoder_att
             + 2 * Bp * N * A          # full_att projection
             + 2 * Bp * N * E)         # context weighted sum
    transcendentals = Bp * N * A + Bp * N          # tanh + exp
    bytes_accessed = 4 * (Bp * N * E + Bp * H + E * A + H * A + 3 * A
                          + Bp * E + Bp * N)

    ctx, alpha = pl.pallas_call(
        _attention_kernel,
        out_shape=(
            jax.ShapeDtypeStruct((Bp, E), jnp.float32),
            jax.ShapeDtypeStruct((Bp, N), jnp.float32),
        ),
        grid_spec=pltpu.PrefetchScalarGridSpec(
            num_scalar_prefetch=0,
            grid=grid,
            in_specs=[
                pl.BlockSpec((Bt, N, E), lambda b: (b, 0, 0)),   # encoder_out
                pl.BlockSpec((Bt, H), lambda b: (b, 0)),         # decoder_hidden
                pl.BlockSpec((E, A), lambda b: (0, 0)),          # W_enc^T
                pl.BlockSpec((1, A), lambda b: (0, 0)),          # b_enc
                pl.BlockSpec((H, A), lambda b: (0, 0)),          # W_dec^T
                pl.BlockSpec((1, A), lambda b: (0, 0)),          # b_dec
                pl.BlockSpec((1, A), lambda b: (0, 0)),          # W_full row
            ],
            out_specs=[
                pl.BlockSpec((Bt, E), lambda b: (b, 0)),         # context
                pl.BlockSpec((Bt, N), lambda b: (b, 0)),         # alpha
            ],
        ),
        compiler_params=pltpu.CompilerParams(
            dimension_semantics=("parallel",)),
        cost_estimate=pl.CostEstimate(
            flops=flops,
            transcendentals=transcendentals,
            bytes_accessed=bytes_accessed),
    )(encoder_out, decoder_hidden, weT, be2, wdT, bd2, wf2)

    return ctx[:B], alpha[:B]


def attention_reference(encoder_out, decoder_hidden, params):
    """Pure-JAX reference mirroring the PyTorch forward exactly (incl. bf)."""
    we, be, wd, bd, wf, bf = (params["we"], params["be"], params["wd"],
                              params["bd"], params["wf"], params["bf"])
    att1 = jnp.einsum("bne,ae->bna", encoder_out, we) + be          # (B,N,A)
    att2 = decoder_hidden @ wd.T + bd                               # (B,A)
    att = jnp.tanh(att1 + att2[:, None, :])                         # (B,N,A)
    e = jnp.einsum("bna,ka->bnk", att, wf)[..., 0] + bf[0]          # (B,N)
    alpha = jax.nn.softmax(e, axis=1)                               # (B,N)
    context = jnp.sum(encoder_out * alpha[:, :, None], axis=1)      # (B,E)
    return context, alpha


def init_params(key, hidden_dim, encoder_dim, attention_dim):
    ks = jax.random.split(key, 6)
    # torch.nn.Linear weight shape: (out_features, in_features)
    def u(k, shape, fan_in):
        bound = 1.0 / jnp.sqrt(fan_in)
        return jax.random.uniform(k, shape, jnp.float32, -bound, bound)
    return {
        "we": u(ks[0], (attention_dim, encoder_dim), encoder_dim),
        "be": u(ks[1], (attention_dim,), encoder_dim),
        "wd": u(ks[2], (attention_dim, hidden_dim), hidden_dim),
        "bd": u(ks[3], (attention_dim,), hidden_dim),
        "wf": u(ks[4], (1, attention_dim), attention_dim),
        "bf": u(ks[5], (1,), attention_dim),
    }


if __name__ == "__main__":
    hidden_dim, encoder_dim, attention_dim = 32, 32, 16
    N = 16                                   # 4x4 feature map flattened

    key = jax.random.PRNGKey(0)
    k_enc, k_dec, k_par, k_enc2, k_dec2 = jax.random.split(key, 5)
    params = init_params(k_par, hidden_dim, encoder_dim, attention_dim)

    # Case 1: small batch -> single grid step covering the whole batch.
    B1 = 8
    enc1 = jax.random.normal(k_enc, (B1, N, encoder_dim), jnp.float32)
    dec1 = jax.random.normal(k_dec, (B1, hidden_dim), jnp.float32)
    ctx1, alpha1 = attention_forward(enc1, dec1, params)
    jax.block_until_ready((ctx1, alpha1))
    ctx1_ref, alpha1_ref = attention_reference(enc1, dec1, params)
    assert jnp.allclose(ctx1, ctx1_ref, atol=1e-5, rtol=1e-5)
    assert jnp.allclose(alpha1, alpha1_ref, atol=1e-5, rtol=1e-5)

    # Case 2: larger batch -> batch-tiled grid (Bt=8) with padding of the tail.
    B2 = 20
    enc2 = jax.random.normal(k_enc2, (B2, N, encoder_dim), jnp.float32)
    dec2 = jax.random.normal(k_dec2, (B2, hidden_dim), jnp.float32)
    ctx2, alpha2 = attention_forward(enc2, dec2, params, block_b=8)
    jax.block_until_ready((ctx2, alpha2))
    ctx2_ref, alpha2_ref = attention_reference(enc2, dec2, params)
    assert jnp.allclose(ctx2, ctx2_ref, atol=1e-5, rtol=1e-5)
    assert jnp.allclose(alpha2, alpha2_ref, atol=1e-5, rtol=1e-5)

    print("KERNEL_OK")
</pallas_src>

<mosaic_0001>
module attributes {stable_mosaic.version = 11 : i64} {
  func.func @_attention_kernel(%arg0: i32, %arg1: memref<8x16x32xf32, #tpu.memory_space<vmem>>, %arg2: memref<8x32xf32, #tpu.memory_space<vmem>>, %arg3: memref<32x16xf32, #tpu.memory_space<vmem>>, %arg4: memref<1x16xf32, #tpu.memory_space<vmem>>, %arg5: memref<32x16xf32, #tpu.memory_space<vmem>>, %arg6: memref<1x16xf32, #tpu.memory_space<vmem>>, %arg7: memref<1x16xf32, #tpu.memory_space<vmem>>, %arg8: memref<8x32xf32, #tpu.memory_space<vmem>>, %arg9: memref<8x16xf32, #tpu.memory_space<vmem>>) attributes {dimension_semantics = [#tpu.dimension_semantics<parallel>], iteration_bounds = array<i64: 1>, scalar_prefetch = 0 : i64, scratch_operands = 0 : i64, tpu.core_type = #tpu.core_type<tc>, window_params = [{transform_indices = @transform_0, window_bounds = array<i64: 8, 16, 32>}, {transform_indices = @transform_1, window_bounds = array<i64: 8, 32>}, {pipeline_mode = #tpu.pipeline_mode<synchronous>, transform_indices = @transform_2, window_bounds = array<i64: 32, 16>}, {pipeline_mode = #tpu.pipeline_mode<synchronous>, transform_indices = @transform_3, window_bounds = array<i64: 1, 16>}, {pipeline_mode = #tpu.pipeline_mode<synchronous>, transform_indices = @transform_4, window_bounds = array<i64: 32, 16>}, {pipeline_mode = #tpu.pipeline_mode<synchronous>, transform_indices = @transform_5, window_bounds = array<i64: 1, 16>}, {pipeline_mode = #tpu.pipeline_mode<synchronous>, transform_indices = @transform_6, window_bounds = array<i64: 1, 16>}, {transform_indices = @transform_7, window_bounds = array<i64: 8, 32>}, {transform_indices = @transform_8, window_bounds = array<i64: 8, 16>}]} {
    %c0 = arith.constant 0 : index
    %c0_0 = arith.constant 0 : index
    %c0_1 = arith.constant 0 : index
    %0 = vector.load %arg1[%c0, %c0_0, %c0_1] : memref<8x16x32xf32, #tpu.memory_space<vmem>>, vector<8x16x32xf32>
    %c0_2 = arith.constant 0 : index
    %c0_3 = arith.constant 0 : index
    %1 = vector.load %arg2[%c0_2, %c0_3] : memref<8x32xf32, #tpu.memory_space<vmem>>, vector<8x32xf32>
    %2 = vector.shape_cast %0 : vector<8x16x32xf32> to vector<128x32xf32>
    %c0_4 = arith.constant 0 : index
    %c0_5 = arith.constant 0 : index
    %3 = vector.load %arg3[%c0_4, %c0_5] : memref<32x16xf32, #tpu.memory_space<vmem>>, vector<32x16xf32>
    %cst = arith.constant dense<0.000000e+00> : vector<128x16xf32>
    %4 = tpu.matmul %2, %3, %cst {dimension_numbers = #tpu.dot_dimension_numbers<[1], [0], [0], [1], [0, 0, 1, 1], [], []>} : vector<128x32xf32>, vector<32x16xf32>, vector<128x16xf32> -> vector<128x16xf32>
    %c0_6 = arith.constant 0 : index
    %c0_7 = arith.constant 0 : index
    %5 = vector.load %arg4[%c0_6, %c0_7] : memref<1x16xf32, #tpu.memory_space<vmem>>, vector<1x16xf32>
    %6 = vector.broadcast %5 : vector<1x16xf32> to vector<128x16xf32>
    %7 = arith.addf %4, %6 : vector<128x16xf32>
    %c0_8 = arith.constant 0 : index
    %c0_9 = arith.constant 0 : index
    %8 = vector.load %arg5[%c0_8, %c0_9] : memref<32x16xf32, #tpu.memory_space<vmem>>, vector<32x16xf32>
    %cst_10 = arith.constant dense<0.000000e+00> : vector<8x16xf32>
    %9 = tpu.matmul %1, %8, %cst_10 {dimension_numbers = #tpu.dot_dimension_numbers<[1], [0], [0], [1], [0, 0, 1, 1], [], []>} : vector<8x32xf32>, vector<32x16xf32>, vector<8x16xf32> -> vector<8x16xf32>
    %c0_11 = arith.constant 0 : index
    %c0_12 = arith.constant 0 : index
    %10 = vector.load %arg6[%c0_11, %c0_12] : memref<1x16xf32, #tpu.memory_space<vmem>>, vector<1x16xf32>
    %11 = vector.broadcast %10 : vector<1x16xf32> to vector<8x16xf32>
    %12 = arith.addf %9, %11 : vector<8x16xf32>
    %13 = vector.shape_cast %7 : vector<128x16xf32> to vector<8x16x16xf32>
    %14 = vector.shape_cast %12 : vector<8x16xf32> to vector<8x1x16xf32>
    %15 = vector.broadcast %14 : vector<8x1x16xf32> to vector<8x16x16xf32>
    %16 = arith.addf %13, %15 : vector<8x16x16xf32>
    %17 = math.tanh %16 : vector<8x16x16xf32>
    %c0_13 = arith.constant 0 : index
    %c0_14 = arith.constant 0 : index
    %18 = vector.load %arg7[%c0_13, %c0_14] : memref<1x16xf32, #tpu.memory_space<vmem>>, vector<1x16xf32>
    %19 = vector.shape_cast %18 : vector<1x16xf32> to vector<1x1x16xf32>
    %20 = vector.broadcast %19 : vector<1x1x16xf32> to vector<8x16x16xf32>
    %21 = arith.mulf %17, %20 : vector<8x16x16xf32>
    %cst_15 = arith.constant dense<0.000000e+00> : vector<8x16xf32>
    %22 = vector.multi_reduction <add>, %21, %cst_15 [2] : vector<8x16x16xf32> to vector<8x16xf32>
    %cst_16 = arith.constant dense<0xFF800000> : vector<8xf32>
    %23 = vector.multi_reduction <maximumf>, %22, %cst_16 [1] : vector<8x16xf32> to vector<8xf32>
    %24 = vector.shape_cast %23 : vector<8xf32> to vector<8x1xf32>
    %25 = vector.broadcast %24 : vector<8x1xf32> to vector<8x16xf32>
    %26 = arith.subf %22, %25 : vector<8x16xf32>
    %27 = math.exp %26 : vector<8x16xf32>
    %cst_17 = arith.constant dense<0.000000e+00> : vector<8xf32>
    %28 = vector.multi_reduction <add>, %27, %cst_17 [1] : vector<8x16xf32> to vector<8xf32>
    %29 = vector.shape_cast %28 : vector<8xf32> to vector<8x1xf32>
    %30 = vector.broadcast %29 : vector<8x1xf32> to vector<8x16xf32>
    %31 = arith.divf %27, %30 : vector<8x16xf32>
    %32 = vector.shape_cast %31 : vector<8x16xf32> to vector<8x16x1xf32>
    %33 = vector.broadcast %32 : vector<8x16x1xf32> to vector<8x16x32xf32>
    %34 = arith.mulf %0, %33 : vector<8x16x32xf32>
    %cst_18 = arith.constant dense<0.000000e+00> : vector<8x32xf32>
    %35 = vector.multi_reduction <add>, %34, %cst_18 [1] : vector<8x16x32xf32> to vector<8x32xf32>
    %c0_19 = arith.constant 0 : index
    %c0_20 = arith.constant 0 : index
    %36 = vector.load %arg8[%c0_19, %c0_20] : memref<8x32xf32, #tpu.memory_space<vmem>>, vector<8x32xf32>
    tpu.vector_store %arg8[%c0_19, %c0_20], %35 {strides = array<i32>} : memref<8x32xf32, #tpu.memory_space<vmem>>, vector<8x32xf32>,
    %c0_21 = arith.constant 0 : index
    %c0_22 = arith.constant 0 : index
    %37 = vector.load %arg9[%c0_21, %c0_22] : memref<8x16xf32, #tpu.memory_space<vmem>>, vector<8x16xf32>
    tpu.vector_store %arg9[%c0_21, %c0_22], %31 {strides = array<i32>} : memref<8x16xf32, #tpu.memory_space<vmem>>, vector<8x16xf32>,
    return
  }
  func.func @transform_0(%arg0: i32) -> (i32, i32, i32) {
    %c0_i32 = arith.constant 0 : i32
    %c0_i32_0 = arith.constant 0 : i32
    %c0_i32_1 = arith.constant 0 : i32
    return %arg0, %c0_i32, %c0_i32_0 : i32, i32, i32
  }
  func.func @transform_1(%arg0: i32) -> (i32, i32) {
    %c0_i32 = arith.constant 0 : i32
    %c0_i32_0 = arith.constant 0 : i32
    return %arg0, %c0_i32 : i32, i32
  }
  func.func @transform_2(%arg0: i32) -> (i32, i32) {
    %c0_i32 = arith.constant 0 : i32
    %c0_i32_0 = arith.constant 0 : i32
    %c0_i32_1 = arith.constant 0 : i32
    return %c0_i32, %c0_i32_0 : i32, i32
  }
  func.func @transform_3(%arg0: i32) -> (i32, i32) {
    %c0_i32 = arith.constant 0 : i32
    %c0_i32_0 = arith.constant 0 : i32
    %c0_i32_1 = arith.constant 0 : i32
    return %c0_i32, %c0_i32_0 : i32, i32
  }
  func.func @transform_4(%arg0: i32) -> (i32, i32) {
    %c0_i32 = arith.constant 0 : i32
    %c0_i32_0 = arith.constant 0 : i32
    %c0_i32_1 = arith.constant 0 : i32
    return %c0_i32, %c0_i32_0 : i32, i32
  }
  func.func @transform_5(%arg0: i32) -> (i32, i32) {
    %c0_i32 = arith.constant 0 : i32
    %c0_i32_0 = arith.constant 0 : i32
    %c0_i32_1 = arith.constant 0 : i32
    return %c0_i32, %c0_i32_0 : i32, i32
  }
  func.func @transform_6(%arg0: i32) -> (i32, i32) {
    %c0_i32 = arith.constant 0 : i32
    %c0_i32_0 = arith.constant 0 : i32
    %c0_i32_1 = arith.constant 0 : i32
    return %c0_i32, %c0_i32_0 : i32, i32
  }
  func.func @transform_7(%arg0: i32) -> (i32, i32) {
    %c0_i32 = arith.constant 0 : i32
    %c0_i32_0 = arith.constant 0 : i32
    return %arg0, %c0_i32 : i32, i32
  }
  func.func @transform_8(%arg0: i32) -> (i32, i32) {
    %c0_i32 = arith.constant 0 : i32
    %c0_i32_0 = arith.constant 0 : i32
    return %arg0, %c0_i32 : i32, i32
  }
}

</mosaic_0001>

<llo_original>
// kernel: tpu_custom_call.1
$region0: #{tpu_custom_call.1}
  #allocation0 [shape = 'u32[]', space=smem, size = 0x4, offset = 0x4, fixed_abs, tag = 'smem constant byte address 0x4 - core index']
  #allocation1 [shape = 'u32[144,128]{1,0:T(1,128)}', space=vmem, size = 0x12000, scoped, tag = 'internal scratch']
  %s0 = inlined_call_operand.hbm [shape: f32[8,16,32], index: 0, kind: input, shape index: {}]
  %s1 = inlined_call_operand.vmem [shape: f32[8,32], index: 1, kind: input, shape index: {}]
  %s2 = inlined_call_operand.vmem [shape: f32[32,16], index: 2, kind: input, shape index: {}]
  %s3 = inlined_call_operand.vmem [shape: f32[1,16], index: 3, kind: input, shape index: {}]
  %s4 = inlined_call_operand.vmem [shape: f32[32,16], index: 4, kind: input, shape index: {}]
  %s5 = inlined_call_operand.vmem [shape: f32[1,16], index: 5, kind: input, shape index: {}]
  %s6 = inlined_call_operand.vmem [shape: f32[1,16], index: 6, kind: input, shape index: {}]
  %s7 = inlined_call_operand.hbm [shape: f32[8,32], index: 7, kind: output, shape index: {0}]
  %s8 = inlined_call_operand.hbm [shape: f32[8,16], index: 8, kind: output, shape index: {1}]
  %9 = xla_tuple %s7, %s8
  %s10 = sld [smem:[#allocation0]]
  $region50: #{tpu_custom_call.1} parent=0
    _
  %s12 = ssub.s32 1, %s10
  %s13 = scalar_select 0, %s12, %s10
  $region1: #{tpu_custom_call.1} parent=0
    #allocation2 [shape = 'u8[65536]{0}', space=vmem, size = 0x10000, scoped, tag = 'input window, operand 0, single buffered']
    #allocation3 [shape = 's32[1]{0}', space=sflag, size = 0x4, scoped, tag = 'scoped memory for tpu_custom_call.1']
    #allocation4 [shape = 's32[1]{0}', space=sflag, size = 0x4, scoped, tag = 'scoped memory for tpu_custom_call.1']
    #allocation5 [shape = 'u8[4096]{0}', space=vmem, size = 0x1000, scoped, tag = 'output window, operand 0, single buffered']
    #allocation6 [shape = 'u8[4096]{0}', space=vmem, size = 0x1000, scoped, tag = 'output window, operand 1, single buffered']
    #allocation7 [shape = 's32[1]{0}', space=sflag, size = 0x4, scoped, tag = 'scoped memory for tpu_custom_call.1']
    %14 = vsyncpa [#allocation3], 0
    %15 = vsyncpa [#allocation4], 0
    %16 = vsyncpa [#allocation7], 0
    // Predicated region
    $region2: #{tpu_custom_call.1} parent=1 // pred_check
      _
    $region3: #{tpu_custom_call.1} parent=1 // pred_check_branch
      %18 = sbr.rel (0) target = $region5
    $region4: #{tpu_custom_call.1} parent=1 // pred_region
      %s20 = ssub.s32 2048, 2048
      %21 = vsyncadd [#allocation3], %s20
      %s22 = sshll.u32 [#allocation2], 4
      %s23 = int_to_ptr.vmem [resolvable:$true] %s22
      %28 = dma.hbm_to_vmem [thread:$0]  %s0, 2048, %s23, [#allocation3], 128, 128, 8
    $region5: #{tpu_custom_call.1} parent=1 // pred_fallthru
      _
    // Predicated region
    $region6: #{tpu_custom_call.1} parent=1 // pred_check
      _
    $region7: #{tpu_custom_call.1} parent=1 // pred_check_branch
      %30 = sbr.rel (0) target = $region9
    $region8: #{tpu_custom_call.1} parent=1 // pred_region
      _
    $region9: #{tpu_custom_call.1} parent=1 // pred_fallthru
      _
    // Predicated region
    $region10: #{tpu_custom_call.1} parent=1 // pred_check
      _
    $region11: #{tpu_custom_call.1} parent=1 // pred_check_branch
      %32 = sbr.rel (0) target = $region13
    $region12: #{tpu_custom_call.1} parent=1 // pred_region
      _
    $region13: #{tpu_custom_call.1} parent=1 // pred_fallthru
      _
    // Predicated region
    $region14: #{tpu_custom_call.1} parent=1 // pred_check
      _
    $region15: #{tpu_custom_call.1} parent=1 // pred_check_branch
      %34 = sbr.rel (0) target = $region17
    $region16: #{tpu_custom_call.1} parent=1 // pred_region
      _
    $region17: #{tpu_custom_call.1} parent=1 // pred_fallthru
      _
    // Predicated region
    $region18: #{tpu_custom_call.1} parent=1 // pred_check
      _
    $region19: #{tpu_custom_call.1} parent=1 // pred_check_branch
      %36 = sbr.rel (0) target = $region21
    $region20: #{tpu_custom_call.1} parent=1 // pred_region
      _
    $region21: #{tpu_custom_call.1} parent=1 // pred_fallthru
      _
    // Predicated region
    $region22: #{tpu_custom_call.1} parent=1 // pred_check
      _
    $region23: #{tpu_custom_call.1} parent=1 // pred_check_branch
      %38 = sbr.rel (0) target = $region25
    $region24: #{tpu_custom_call.1} parent=1 // pred_region
      _
    $region25: #{tpu_custom_call.1} parent=1 // pred_fallthru
      _
    // Predicated region
    $region26: #{tpu_custom_call.1} parent=1 // pred_check
      _
    $region27: #{tpu_custom_call.1} parent=1 // pred_check_branch
      %40 = sbr.rel (0) target = $region29
    $region28: #{tpu_custom_call.1} parent=1 // pred_region
      _
    $region29: #{tpu_custom_call.1} parent=1 // pred_fallthru
      _
    // Predicated region
    $region30: #{tpu_custom_call.1} parent=1 // pred_check
      _
    $region31: #{tpu_custom_call.1} parent=1 // pred_check_branch
      %42 = sbr.rel (0) target = $region33
    $region32: #{tpu_custom_call.1} parent=1 // pred_region
      %43 = dma.done [#allocation3], 2048
    $region33: #{tpu_custom_call.1} parent=1 // pred_fallthru
      _
    %v44 = vld [vmem:[#allocation2] sm:$0xff]
    %v45 = vld [vmem:[#allocation2 + $0x8] sm:$0xff]
    %v46 = vld [vmem:[#allocation2 + $0x10] sm:$0xff]
    %v47 = vld [vmem:[#allocation2 + $0x18] sm:$0xff]
    %v48 = vld [vmem:[#allocation2 + $0x20] sm:$0xff]
    %v49 = vld [vmem:[#allocation2 + $0x28] sm:$0xff]
    %v50 = vld [vmem:[#allocation2 + $0x30] sm:$0xff]
    %v51 = vld [vmem:[#allocation2 + $0x38] sm:$0xff]
    %v52 = vld [vmem:[#allocation2 + $0x40] sm:$0xff]
    %v53 = vld [vmem:[#allocation2 + $0x48] sm:$0xff]
    %v54 = vld [vmem:[#allocation2 + $0x50] sm:$0xff]
    %v55 = vld [vmem:[#allocation2 + $0x58] sm:$0xff]
    %v56 = vld [vmem:[#allocation2 + $0x60] sm:$0xff]
    %v57 = vld [vmem:[#allocation2 + $0x68] sm:$0xff]
    %v58 = vld [vmem:[#allocation2 + $0x70] sm:$0xff]
    %v59 = vld [vmem:[#allocation2 + $0x78] sm:$0xff]
    %v60 = vld [vmem:[%s1] sm:$0xff]
    %v61 = vld [vmem:[%s2] sm:$0xff]
    %v62 = vld [vmem:[%s2 + $0x8] sm:$0xff]
    %v63 = vld [vmem:[%s2 + $0x10] sm:$0xff]
    %v64 = vld [vmem:[%s2 + $0x18] sm:$0xff]
    %v65 = vld [vmem:[%s3] sm:$0x1]
    %v67 = vlaneseq
    %v68 = vshrl.u32 %v67, 7
    %v69 = vsub.s32 0, %v68
    %v70 = vrot.slane %v65, %v69
    %vm72 = vcmask 261120
    %v74 = vsel %vm72, %v44, 0
    %v77 = vsel %vm72, %v45, 0
    %v80 = vsel %vm72, %v46, 0
    %v83 = vsel %vm72, %v47, 0
    %v86 = vsel %vm72, %v48, 0
    %v89 = vsel %vm72, %v49, 0
    %v92 = vsel %vm72, %v50, 0
    %v95 = vsel %vm72, %v51, 0
    %v98 = vsel %vm72, %v52, 0
    %v101 = vsel %vm72, %v53, 0
    %v104 = vsel %vm72, %v54, 0
    %v107 = vsel %vm72, %v55, 0
    %v110 = vsel %vm72, %v56, 0
    %v113 = vsel %vm72, %v57, 0
    %v116 = vsel %vm72, %v58, 0
    %v119 = vsel %vm72, %v59, 0
    %121 = vmatprep.subr.mxu0 0.0
    %122 = vmatpush1.msra.mxu0 %v61
    %123 = vmatprep.subr.mxu0 0.0
    %124 = vmatpush1.msra.mxu0 %v62
    %125 = vmatprep.subr.mxu0 0.0
    %126 = vmatpush1.msra.mxu0 %v63
    %127 = vmatprep.subr.mxu0 0.0
    %128 = vmatpush1.msra.mxu0 %v64
    %129 = vmatprep.subr.mxu0 0.0
    %130 = vmatpush1.msra.mxu0 0.0
    %131 = vmatprep.subr.mxu0 0.0
    %132 = vmatpush1.msra.mxu0 0.0
    %133 = vmatprep.subr.mxu0 0.0
    %134 = vmatpush1.msra.mxu0 0.0
    %135 = vmatprep.subr.mxu0 0.0
    %136 = vmatpush1.msra.mxu0 0.0
    %137 = vmatprep.subr.mxu0 0.0
    %138 = vmatpush1.msra.mxu0 0.0
    %139 = vmatprep.subr.mxu0 0.0
    %140 = vmatpush1.msra.mxu0 0.0
    %141 = vmatprep.subr.mxu0 0.0
    %142 = vmatpush1.msra.mxu0 0.0
    %143 = vmatprep.subr.mxu0 0.0
    %144 = vmatpush1.msra.mxu0 0.0
    %145 = vmatprep.subr.mxu0 0.0
    %146 = vmatpush1.msra.mxu0 0.0
    %147 = vmatprep.subr.mxu0 0.0
    %148 = vmatpush1.msra.mxu0 0.0
    %149 = vmatprep.subr.mxu0 0.0
    %150 = vmatpush1.msra.mxu0 0.0
    %151 = vmatprep.subr.mxu0 0.0
    %152 = vmatpush1.msra.mxu0 0.0
    %153 = vmatprep.subr.mxu0 0.0
    %154 = vmatpush1.msra.mxu0 0.0
    %155 = vmatprep.subr.mxu0 0.0
    %156 = vmatpush1.msra.mxu0 0.0
    %157 = vmatprep.subr.mxu0 0.0
    %158 = vmatpush1.msra.mxu0 0.0
    %159 = vmatprep.subr.mxu0 0.0
    %160 = vmatpush1.msra.mxu0 0.0
    %161 = vmatprep.subr.mxu0 0.0
    %162 = vmatpush1.msra.mxu0 0.0
    %163 = vmatprep.subr.mxu0 0.0
    %164 = vmatpush1.msra.mxu0 0.0
    %165 = vmatprep.subr.mxu0 0.0
    %166 = vmatpush1.msra.mxu0 0.0
    %167 = vmatprep.subr.mxu0 0.0
    %168 = vmatpush1.msra.mxu0 0.0
    %169 = vmatprep.subr.mxu0 0.0
    %170 = vmatpush1.msra.mxu0 0.0
    %171 = vmatprep.subr.mxu0 0.0
    %172 = vmatpush1.msra.mxu0 0.0
    %173 = vmatprep.subr.mxu0 0.0
    %174 = vmatpush1.msra.mxu0 0.0
    %175 = vmatprep.subr.mxu0 0.0
    %176 = vmatpush1.msra.mxu0 0.0
    %177 = vmatprep.subr.mxu0 0.0
    %178 = vmatpush1.msra.mxu0 0.0
    %179 = vmatprep.subr.mxu0 0.0
    %180 = vmatpush1.msra.mxu0 0.0
    %181 = vmatprep.subr.mxu0 0.0
    %182 = vmatpush1.msra.mxu0 0.0
    %183 = vmatprep.subr.mxu0 0.0
    %184 = vmatpush1.msra.mxu0 0.0
    %185 = vmatprep.mubr.f32.mxu0 0.0
    %186 = vmatmul.mubr.f32.gmra.mrb[0].mxu0 %v74
    %v187 = vpop.f32.mrb[0].mxu0
    %v188 = vadd.f32 %v70, %v187
    %v189 = vpop.f32.mrb[0].mxu0
    %190 = vmatprep.mubr.f32.mxu0 0.0
    %191 = vmatmul.mubr.f32.gmra.mrb[0].mxu0 %v77
    %v192 = vpop.f32.mrb[0].mxu0
    %v193 = vadd.f32 %v70, %v192
    %v194 = vpop.f32.mrb[0].mxu0
    %195 = vmatprep.mubr.f32.mxu0 0.0
    %196 = vmatmul.mubr.f32.gmra.mrb[0].mxu0 %v80
    %v197 = vpop.f32.mrb[0].mxu0
    %v198 = vadd.f32 %v70, %v197
    %v199 = vpop.f32.mrb[0].mxu0
    %200 = vmatprep.mubr.f32.mxu0 0.0
    %201 = vmatmul.mubr.f32.gmra.mrb[0].mxu0 %v83
    %v202 = vpop.f32.mrb[0].mxu0
    %v203 = vadd.f32 %v70, %v202
    %v204 = vpop.f32.mrb[0].mxu0
    %205 = vmatprep.mubr.f32.mxu0 0.0
    %206 = vmatmul.mubr.f32.gmra.mrb[0].mxu0 %v86
    %v207 = vpop.f32.mrb[0].mxu0
    %v208 = vadd.f32 %v70, %v207
    %v209 = vpop.f32.mrb[0].mxu0
    %210 = vmatprep.mubr.f32.mxu0 0.0
    %211 = vmatmul.mubr.f32.gmra.mrb[0].mxu0 %v89
    %v212 = vpop.f32.mrb[0].mxu0
    %v213 = vadd.f32 %v70, %v212
    %v214 = vpop.f32.mrb[0].mxu0
    %215 = vmatprep.mubr.f32.mxu0 0.0
    %216 = vmatmul.mubr.f32.gmra.mrb[0].mxu0 %v92
    %v217 = vpop.f32.mrb[0].mxu0
    %v218 = vadd.f32 %v70, %v217
    %v219 = vpop.f32.mrb[0].mxu0
    %220 = vmatprep.mubr.f32.mxu0 0.0
    %221 = vmatmul.mubr.f32.gmra.mrb[0].mxu0 %v95
    %v222 = vpop.f32.mrb[0].mxu0
    %v223 = vadd.f32 %v70, %v222
    %v224 = vpop.f32.mrb[0].mxu0
    %225 = vmatprep.mubr.f32.mxu0 0.0
    %226 = vmatmul.mubr.f32.gmra.mrb[0].mxu0 %v98
    %v227 = vpop.f32.mrb[0].mxu0
    %v228 = vadd.f32 %v70, %v227
    %v229 = vpop.f32.mrb[0].mxu0
    %230 = vmatprep.mubr.f32.mxu0 0.0
    %231 = vmatmul.mubr.f32.gmra.mrb[0].mxu0 %v101
    %v232 = vpop.f32.mrb[0].mxu0
    %v233 = vadd.f32 %v70, %v232
    %v234 = vpop.f32.mrb[0].mxu0
    %235 = vmatprep.mubr.f32.mxu0 0.0
    %236 = vmatmul.mubr.f32.gmra.mrb[0].mxu0 %v104
    %v237 = vpop.f32.mrb[0].mxu0
    %v238 = vadd.f32 %v70, %v237
    %v239 = vpop.f32.mrb[0].mxu0
    %240 = vmatprep.mubr.f32.mxu0 0.0
    %241 = vmatmul.mubr.f32.gmra.mrb[0].mxu0 %v107
    %v242 = vpop.f32.mrb[0].mxu0
    %v243 = vadd.f32 %v70, %v242
    %v244 = vpop.f32.mrb[0].mxu0
    %245 = vmatprep.mubr.f32.mxu0 0.0
    %246 = vmatmul.mubr.f32.gmra.mrb[0].mxu0 %v110
    %v247 = vpop.f32.mrb[0].mxu0
    %v248 = vadd.f32 %v70, %v247
    %v249 = vpop.f32.mrb[0].mxu0
    %250 = vmatprep.mubr.f32.mxu0 0.0
    %251 = vmatmul.mubr.f32.gmra.mrb[0].mxu0 %v113
    %v252 = vpop.f32.mrb[0].mxu0
    %v253 = vadd.f32 %v70, %v252
    %v254 = vpop.f32.mrb[0].mxu0
    %255 = vmatprep.mubr.f32.mxu0 0.0
    %256 = vmatmul.mubr.f32.gmra.mrb[0].mxu0 %v116
    %v257 = vpop.f32.mrb[0].mxu0
    %v258 = vadd.f32 %v70, %v257
    %v259 = vpop.f32.mrb[0].mxu0
    %260 = vmatprep.mubr.f32.mxu0 0.0
    %261 = vmatmul.mubr.f32.gmra.mrb[0].mxu0 %v119
    %v262 = vpop.f32.mrb[0].mxu0
    %v263 = vadd.f32 %v70, %v262
    %v264 = vpop.f32.mrb[0].mxu0
    %265 = vdwg.mxu0
    %v266 = vld [vmem:[%s4] sm:$0xff]
    %v267 = vld [vmem:[%s4 + $0x8] sm:$0xff]
    %v268 = vld [vmem:[%s4 + $0x10] sm:$0xff]
    %v269 = vld [vmem:[%s4 + $0x18] sm:$0xff]
    %v270 = vld [vmem:[%s5] sm:$0x1]
    %v272 = vlaneseq
    %v273 = vshrl.u32 %v272, 7
    %v274 = vsub.s32 0, %v273
    %v275 = vrot.slane %v270, %v274
    %v278 = vsel %vm72, %v60, 0
    %280 = vmatprep.subr.mxu0 0.0
    %281 = vmatpush1.msra.mxu0 %v266
    %282 = vmatprep.subr.mxu0 0.0
    %283 = vmatpush1.msra.mxu0 %v267
    %284 = vmatprep.subr.mxu0 0.0
    %285 = vmatpush1.msra.mxu0 %v268
    %286 = vmatprep.subr.mxu0 0.0
    %287 = vmatpush1.msra.mxu0 %v269
    %288 = vmatprep.subr.mxu0 0.0
    %289 = vmatpush1.msra.mxu0 0.0
    %290 = vmatprep.subr.mxu0 0.0
    %291 = vmatpush1.msra.mxu0 0.0
    %292 = vmatprep.subr.mxu0 0.0
    %293 = vmatpush1.msra.mxu0 0.0
    %294 = vmatprep.subr.mxu0 0.0
    %295 = vmatpush1.msra.mxu0 0.0
    %296 = vmatprep.subr.mxu0 0.0
    %297 = vmatpush1.msra.mxu0 0.0
    %298 = vmatprep.subr.mxu0 0.0
    %299 = vmatpush1.msra.mxu0 0.0
    %300 = vmatprep.subr.mxu0 0.0
    %301 = vmatpush1.msra.mxu0 0.0
    %302 = vmatprep.subr.mxu0 0.0
    %303 = vmatpush1.msra.mxu0 0.0
    %304 = vmatprep.subr.mxu0 0.0
    %305 = vmatpush1.msra.mxu0 0.0
    %306 = vmatprep.subr.mxu0 0.0
    %307 = vmatpush1.msra.mxu0 0.0
    %308 = vmatprep.subr.mxu0 0.0
    %309 = vmatpush1.msra.mxu0 0.0
    %310 = vmatprep.subr.mxu0 0.0
    %311 = vmatpush1.msra.mxu0 0.0
    %312 = vmatprep.subr.mxu0 0.0
    %313 = vmatpush1.msra.mxu0 0.0
    %314 = vmatprep.subr.mxu0 0.0
    %315 = vmatpush1.msra.mxu0 0.0
    %316 = vmatprep.subr.mxu0 0.0
    %317 = vmatpush1.msra.mxu0 0.0
    %318 = vmatprep.subr.mxu0 0.0
    %319 = vmatpush1.msra.mxu0 0.0
    %320 = vmatprep.subr.mxu0 0.0
    %321 = vmatpush1.msra.mxu0 0.0
    %322 = vmatprep.subr.mxu0 0.0
    %323 = vmatpush1.msra.mxu0 0.0
    %324 = vmatprep.subr.mxu0 0.0
    %325 = vmatpush1.msra.mxu0 0.0
    %326 = vmatprep.subr.mxu0 0.0
    %327 = vmatpush1.msra.mxu0 0.0
    %328 = vmatprep.subr.mxu0 0.0
    %329 = vmatpush1.msra.mxu0 0.0
    %330 = vmatprep.subr.mxu0 0.0
    %331 = vmatpush1.msra.mxu0 0.0
    %332 = vmatprep.subr.mxu0 0.0
    %333 = vmatpush1.msra.mxu0 0.0
    %334 = vmatprep.subr.mxu0 0.0
    %335 = vmatpush1.msra.mxu0 0.0
    %336 = vmatprep.subr.mxu0 0.0
    %337 = vmatpush1.msra.mxu0 0.0
    %338 = vmatprep.subr.mxu0 0.0
    %339 = vmatpush1.msra.mxu0 0.0
    %340 = vmatprep.subr.mxu0 0.0
    %341 = vmatpush1.msra.mxu0 0.0
    %342 = vmatprep.subr.mxu0 0.0
    %343 = vmatpush1.msra.mxu0 0.0
    %344 = vmatprep.mubr.f32.mxu0 0.0
    %345 = vmatmul.mubr.f32.gmra.mrb[0].mxu0 %v278
    %v346 = vpop.f32.mrb[0].mxu0
    %v347 = vadd.f32 %v275, %v346
    %v348 = vpop.f32.mrb[0].mxu0
    %349 = vdwg.mxu0
    %v351 = vcombine.high %v347, %v347
    %v353 = vunpack.c.l.s4 1966171168
    %v354 = vunpack.c.0.s8 %v353
    %v355 = vlaneseq
    %v356 = vshrl.u32 %v355, 7
    %v357 = vsub.s32 %v354, %v356
    %v358 = vrot.slane %v347, %v357
    %v360 = vunpack.c.l.s4 1966171168
    %v361 = vunpack.c.0.s8 %v360
    %v362 = vlaneseq
    %v363 = vshrl.u32 %v362, 7
    %v364 = vsub.s32 %v361, %v363
    %v365 = vrot.slane %v351, %v364
    %v366 = vcombine.high %v358, %v358
    %v367 = vcombine.high %v365, %v365
    %v369 = vunpack.c.l.s4 1966171168
    %v370 = vunpack.c.0.s8 %v369
    %v371 = vlaneseq
    %v372 = vshrl.u32 %v371, 7
    %v373 = vsub.s32 %v370, %v372
    %v374 = vrot.slane %v358, %v373
    %v376 = vunpack.c.l.s4 1966171168
    %v377 = vunpack.c.0.s8 %v376
    %v378 = vlaneseq
    %v379 = vshrl.u32 %v378, 7
    %v380 = vsub.s32 %v377, %v379
    %v381 = vrot.slane %v365, %v380
    %v383 = vunpack.c.l.s4 1966171168
    %v384 = vunpack.c.0.s8 %v383
    %v385 = vlaneseq
    %v386 = vshrl.u32 %v385, 7
    %v387 = vsub.s32 %v384, %v386
    %v388 = vrot.slane %v366, %v387
    %v390 = vunpack.c.l.s4 1966171168
    %v391 = vunpack.c.0.s8 %v390
    %v392 = vlaneseq
    %v393 = vshrl.u32 %v392, 7
    %v394 = vsub.s32 %v391, %v393
    %v395 = vrot.slane %v367, %v394
    %v396 = vcombine.high %v374, %v374
    %v397 = vcombine.high %v381, %v381
    %v398 = vcombine.high %v388, %v388
    %v399 = vcombine.high %v395, %v395
    %v400 = vlaneseq
    %v401 = vshrl.u32 %v400, 7
    %v402 = vsub.s32 0, %v401
    %v403 = vrot.slane %v374, %v402
    %v404 = vlaneseq
    %v405 = vshrl.u32 %v404, 7
    %v406 = vsub.s32 0, %v405
    %v407 = vrot.slane %v388, %v406
    %v408 = vlaneseq
    %v409 = vshrl.u32 %v408, 7
    %v410 = vsub.s32 0, %v409
    %v411 = vrot.slane %v396, %v410
    %v412 = vlaneseq
    %v413 = vshrl.u32 %v412, 7
    %v414 = vsub.s32 0, %v413
    %v415 = vrot.slane %v398, %v414
    %v416 = vlaneseq
    %v417 = vshrl.u32 %v416, 7
    %v418 = vsub.s32 0, %v417
    %v419 = vrot.slane %v381, %v418
    %v420 = vlaneseq
    %v421 = vshrl.u32 %v420, 7
    %v422 = vsub.s32 0, %v421
    %v423 = vrot.slane %v395, %v422
    %v424 = vlaneseq
    %v425 = vshrl.u32 %v424, 7
    %v426 = vsub.s32 0, %v425
    %v427 = vrot.slane %v397, %v426
    %v428 = vlaneseq
    %v429 = vshrl.u32 %v428, 7
    %v430 = vsub.s32 0, %v429
    %v431 = vrot.slane %v399, %v430
    %v440 = vadd.f32 %v188, %v403
    %v441 = vadd.f32 %v193, %v403
    %v442 = vadd.f32 %v198, %v407
    %v443 = vadd.f32 %v203, %v407
    %v444 = vadd.f32 %v208, %v411
    %v445 = vadd.f32 %v213, %v411
    %v446 = vadd.f32 %v218, %v415
    %v447 = vadd.f32 %v223, %v415
    %v448 = vadd.f32 %v228, %v419
    %v449 = vadd.f32 %v233, %v419
    %v450 = vadd.f32 %v238, %v423
    %v451 = vadd.f32 %v243, %v423
    %v452 = vadd.f32 %v248, %v427
    %v453 = vadd.f32 %v253, %v427
    %v454 = vadd.f32 %v258, %v431
    %v455 = vadd.f32 %v263, %v431
    %v456 = vtanh.pop %v440
    %v457 = vtanh.pop %v441
    %v458 = vtanh.pop %v442
    %v459 = vtanh.pop %v443
    %v460 = vtanh.pop %v444
    %v461 = vtanh.pop %v445
    %v462 = vtanh.pop %v446
    %v463 = vtanh.pop %v447
    %v464 = vtanh.pop %v448
    %v465 = vtanh.pop %v449
    %v466 = vtanh.pop %v450
    %v467 = vtanh.pop %v451
    %v468 = vtanh.pop %v452
    %v469 = vtanh.pop %v453
    %v470 = vtanh.pop %v454
    %v471 = vtanh.pop %v455
    %v472 = vld [vmem:[%s6] sm:$0x1]
    %v474 = vlaneseq
    %v475 = vshrl.u32 %v474, 7
    %v476 = vsub.s32 0, %v475
    %v477 = vrot.slane %v472, %v476
    %v479 = vmul.f32 %v456, %v477
    %v480 = vmul.f32 %v457, %v477
    %v481 = vmul.f32 %v458, %v477
    %v482 = vmul.f32 %v459, %v477
    %v483 = vmul.f32 %v460, %v477
    %v484 = vmul.f32 %v461, %v477
    %v485 = vmul.f32 %v462, %v477
    %v486 = vmul.f32 %v463, %v477
    %v487 = vmul.f32 %v464, %v477
    %v488 = vmul.f32 %v465, %v477
    %v489 = vmul.f32 %v466, %v477
    %v490 = vmul.f32 %v467, %v477
    %v491 = vmul.f32 %v468, %v477
    %v492 = vmul.f32 %v469, %v477
    %v493 = vmul.f32 %v470, %v477
    %v494 = vmul.f32 %v471, %v477
    %vm495 = vcmask 130048
    %v496 = vsel %vm495, %v479, 0.0
    %497 = vadd.xlane.f32.xlu0 %v496
    %v498 = vpop.xlane.xlu0 %497
    %v499 = vsel %vm495, %v480, 0.0
    %500 = vadd.xlane.f32.xlu0 %v499
    %v501 = vpop.xlane.xlu0 %500
    %v502 = vsel %vm495, %v481, 0.0
    %503 = vadd.xlane.f32.xlu0 %v502
    %v504 = vpop.xlane.xlu0 %503
    %v505 = vsel %vm495, %v482, 0.0
    %506 = vadd.xlane.f32.xlu0 %v505
    %v507 = vpop.xlane.xlu0 %506
    %v508 = vsel %vm495, %v483, 0.0
    %509 = vadd.xlane.f32.xlu0 %v508
    %v510 = vpop.xlane.xlu0 %509
    %v511 = vsel %vm495, %v484, 0.0
    %512 = vadd.xlane.f32.xlu0 %v511
    %v513 = vpop.xlane.xlu0 %512
    %v514 = vsel %vm495, %v485, 0.0
    %515 = vadd.xlane.f32.xlu0 %v514
    %v516 = vpop.xlane.xlu0 %515
    %v517 = vsel %vm495, %v486, 0.0
    %518 = vadd.xlane.f32.xlu0 %v517
    %v519 = vpop.xlane.xlu0 %518
    %v520 = vsel %vm495, %v487, 0.0
    %521 = vadd.xlane.f32.xlu0 %v520
    %v522 = vpop.xlane.xlu0 %521
    %v523 = vsel %vm495, %v488, 0.0
    %524 = vadd.xlane.f32.xlu0 %v523
    %v525 = vpop.xlane.xlu0 %524
    %v526 = vsel %vm495, %v489, 0.0
    %527 = vadd.xlane.f32.xlu0 %v526
    %v528 = vpop.xlane.xlu0 %527
    %v529 = vsel %vm495, %v490, 0.0
    %530 = vadd.xlane.f32.xlu0 %v529
    %v531 = vpop.xlane.xlu0 %530
    %v532 = vsel %vm495, %v491, 0.0
    %533 = vadd.xlane.f32.xlu0 %v532
    %v534 = vpop.xlane.xlu0 %533
    %v535 = vsel %vm495, %v492, 0.0
    %536 = vadd.xlane.f32.xlu0 %v535
    %v537 = vpop.xlane.xlu0 %536
    %v538 = vsel %vm495, %v493, 0.0
    %539 = vadd.xlane.f32.xlu0 %v538
    %v540 = vpop.xlane.xlu0 %539
    %v541 = vsel %vm495, %v494, 0.0
    %542 = vadd.xlane.f32.xlu0 %v541
    %v543 = vpop.xlane.xlu0 %542
    %v560 = vlaneseq
    %v561 = vand.u32 %v560, 127
    %v562 = vlaneseq
    %v563 = vshrl.u32 %v562, 7
    %v564 = vsub.s32 %v561, %v563
    %v565 = vrot.slane %v498, %v564
    %v566 = vadd.s32 %v561, 4294967288
    %v567 = vlaneseq
    %v568 = vshrl.u32 %v567, 7
    %v569 = vsub.s32 %v566, %v568
    %v570 = vrot.slane %v501, %v569
    %vm571 = vcmask 130112
    %v572 = vsel %vm571, %v570, %v565
    %v573 = vlaneseq
    %v574 = vshrl.u32 %v573, 7
    %v575 = vsub.s32 %v561, %v574
    %v576 = vrot.slane %v504, %v575
    %v577 = vlaneseq
    %v578 = vshrl.u32 %v577, 7
    %v579 = vsub.s32 %v566, %v578
    %v580 = vrot.slane %v507, %v579
    %v581 = vsel %vm571, %v580, %v576
    %v582 = vlaneseq
    %v583 = vshrl.u32 %v582, 7
    %v584 = vsub.s32 %v561, %v583
    %v585 = vrot.slane %v510, %v584
    %v586 = vlaneseq
    %v587 = vshrl.u32 %v586, 7
    %v588 = vsub.s32 %v566, %v587
    %v589 = vrot.slane %v513, %v588
    %v590 = vsel %vm571, %v589, %v585
    %v591 = vlaneseq
    %v592 = vshrl.u32 %v591, 7
    %v593 = vsub.s32 %v561, %v592
    %v594 = vrot.slane %v516, %v593
    %v595 = vlaneseq
    %v596 = vshrl.u32 %v595, 7
    %v597 = vsub.s32 %v566, %v596
    %v598 = vrot.slane %v519, %v597
    %v599 = vsel %vm571, %v598, %v594
    %v600 = vlaneseq
    %v601 = vshrl.u32 %v600, 7
    %v602 = vsub.s32 %v561, %v601
    %v603 = vrot.slane %v522, %v602
    %v604 = vlaneseq
    %v605 = vshrl.u32 %v604, 7
    %v606 = vsub.s32 %v566, %v605
    %v607 = vrot.slane %v525, %v606
    %v608 = vsel %vm571, %v607, %v603
    %v609 = vlaneseq
    %v610 = vshrl.u32 %v609, 7
    %v611 = vsub.s32 %v561, %v610
    %v612 = vrot.slane %v528, %v611
    %v613 = vlaneseq
    %v614 = vshrl.u32 %v613, 7
    %v615 = vsub.s32 %v566, %v614
    %v616 = vrot.slane %v531, %v615
    %v617 = vsel %vm571, %v616, %v612
    %v618 = vlaneseq
    %v619 = vshrl.u32 %v618, 7
    %v620 = vsub.s32 %v561, %v619
    %v621 = vrot.slane %v534, %v620
    %v622 = vlaneseq
    %v623 = vshrl.u32 %v622, 7
    %v624 = vsub.s32 %v566, %v623
    %v625 = vrot.slane %v537, %v624
    %v626 = vsel %vm571, %v625, %v621
    %v627 = vlaneseq
    %v628 = vshrl.u32 %v627, 7
    %v629 = vsub.s32 %v561, %v628
    %v630 = vrot.slane %v540, %v629
    %v631 = vlaneseq
    %v632 = vshrl.u32 %v631, 7
    %v633 = vsub.s32 %v566, %v632
    %v634 = vrot.slane %v543, %v633
    %v635 = vsel %vm571, %v634, %v630
    %vm636 = vcmask 1041409
    %v637 = vsel %vm636, %v581, %v572
    %vm638 = vcmask 1042434
    %v639 = vsel %vm638, %v590, %v637
    %vm640 = vcmask 1043459
    %v641 = vsel %vm640, %v599, %v639
    %vm642 = vcmask 1044484
    %v643 = vsel %vm642, %v608, %v641
    %vm644 = vcmask 1045509
    %v645 = vsel %vm644, %v617, %v643
    %vm646 = vcmask 1046534
    %v647 = vsel %vm646, %v626, %v645
    %vm648 = vcmask 1047559
    %v649 = vsel %vm648, %v635, %v647
    %v651 = vsel %vm495, %v649, -inf
    %652 = vmax.xlane.f32.xlu0 %v651
    %v653 = vpop.xlane.xlu0 %652
    %v655 = vlaneseq
    %v656 = vshrl.u32 %v655, 7
    %v657 = vsub.s32 0, %v656
    %v658 = vrot.slane %v653, %v657
    %v659 = vlaneseq
    %v660 = vshrl.u32 %v659, 7
    %v661 = vsub.s32 1, %v660
    %v662 = vrot.slane %v653, %v661
    %v663 = vlaneseq
    %v664 = vshrl.u32 %v663, 7
    %v665 = vsub.s32 2, %v664
    %v666 = vrot.slane %v653, %v665
    %v667 = vlaneseq
    %v668 = vshrl.u32 %v667, 7
    %v669 = vsub.s32 3, %v668
    %v670 = vrot.slane %v653, %v669
    %v671 = vlaneseq
    %v672 = vshrl.u32 %v671, 7
    %v673 = vsub.s32 4, %v672
    %v674 = vrot.slane %v653, %v673
    %v675 = vlaneseq
    %v676 = vshrl.u32 %v675, 7
    %v677 = vsub.s32 5, %v676
    %v678 = vrot.slane %v653, %v677
    %v679 = vlaneseq
    %v680 = vshrl.u32 %v679, 7
    %v681 = vsub.s32 6, %v680
    %v682 = vrot.slane %v653, %v681
    %v683 = vlaneseq
    %v684 = vshrl.u32 %v683, 7
    %v685 = vsub.s32 7, %v684
    %v686 = vrot.slane %v653, %v685
    %v695 = vsub.f32 %v498, %v658
    %v696 = vsub.f32 %v501, %v658
    %v697 = vsub.f32 %v504, %v662
    %v698 = vsub.f32 %v507, %v662
    %v699 = vsub.f32 %v510, %v666
    %v700 = vsub.f32 %v513, %v666
    %v701 = vsub.f32 %v516, %v670
    %v702 = vsub.f32 %v519, %v670
    %v703 = vsub.f32 %v522, %v674
    %v704 = vsub.f32 %v525, %v674
    %v705 = vsub.f32 %v528, %v678
    %v706 = vsub.f32 %v531, %v678
    %v707 = vsub.f32 %v534, %v682
    %v708 = vsub.f32 %v537, %v682
    %v709 = vsub.f32 %v540, %v686
    %v710 = vsub.f32 %v543, %v686
    %v711 = vmul.f32 %v695, 1.442695
    %v712 = vpow.pop %v711
    %v713 = vmul.f32 %v696, 1.442695
    %v714 = vpow.pop %v713
    %v715 = vmul.f32 %v697, 1.442695
    %v716 = vpow.pop %v715
    %v717 = vmul.f32 %v698, 1.442695
    %v718 = vpow.pop %v717
    %v719 = vmul.f32 %v699, 1.442695
    %v720 = vpow.pop %v719
    %v721 = vmul.f32 %v700, 1.442695
    %v722 = vpow.pop %v721
    %v723 = vmul.f32 %v701, 1.442695
    %v724 = vpow.pop %v723
    %v725 = vmul.f32 %v702, 1.442695
    %v726 = vpow.pop %v725
    %v727 = vmul.f32 %v703, 1.442695
    %v728 = vpow.pop %v727
    %v729 = vmul.f32 %v704, 1.442695
    %v730 = vpow.pop %v729
    %v731 = vmul.f32 %v705, 1.442695
    %v732 = vpow.pop %v731
    %v733 = vmul.f32 %v706, 1.442695
    %v734 = vpow.pop %v733
    %v735 = vmul.f32 %v707, 1.442695
    %v736 = vpow.pop %v735
    %v737 = vmul.f32 %v708, 1.442695
    %v738 = vpow.pop %v737
    %v739 = vmul.f32 %v709, 1.442695
    %v740 = vpow.pop %v739
    %v741 = vmul.f32 %v710, 1.442695
    %v742 = vpow.pop %v741
    %759 = vset.pattern.permute.xlu0 0
    %760 = vperm.xlu0 %759, %v712
    %v761 = vpop.permute.xlu0 %760
    %762 = vset.pattern.permute.xlu0 0
    %763 = vperm.xlu0 %762, %v714
    %v764 = vpop.permute.xlu0 %763
    %765 = vset.pattern.permute.xlu0 0
    %766 = vperm.xlu0 %765, %v716
    %v767 = vpop.permute.xlu0 %766
    %768 = vset.pattern.permute.xlu0 0
    %769 = vperm.xlu0 %768, %v718
    %v770 = vpop.permute.xlu0 %769
    %771 = vset.pattern.permute.xlu0 0
    %772 = vperm.xlu0 %771, %v720
    %v773 = vpop.permute.xlu0 %772
    %774 = vset.pattern.permute.xlu0 0
    %775 = vperm.xlu0 %774, %v722
    %v776 = vpop.permute.xlu0 %775
    %777 = vset.pattern.permute.xlu0 0
    %778 = vperm.xlu0 %777, %v724
    %v779 = vpop.permute.xlu0 %778
    %780 = vset.pattern.permute.xlu0 0
    %781 = vperm.xlu0 %780, %v726
    %v782 = vpop.permute.xlu0 %781
    %783 = vset.pattern.permute.xlu0 0
    %784 = vperm.xlu0 %783, %v728
    %v785 = vpop.permute.xlu0 %784
    %786 = vset.pattern.permute.xlu0 0
    %787 = vperm.xlu0 %786, %v730
    %v788 = vpop.permute.xlu0 %787
    %789 = vset.pattern.permute.xlu0 0
    %790 = vperm.xlu0 %789, %v732
    %v791 = vpop.permute.xlu0 %790
    %792 = vset.pattern.permute.xlu0 0
    %793 = vperm.xlu0 %792, %v734
    %v794 = vpop.permute.xlu0 %793
    %795 = vset.pattern.permute.xlu0 0
    %796 = vperm.xlu0 %795, %v736
    %v797 = vpop.permute.xlu0 %796
    %798 = vset.pattern.permute.xlu0 0
    %799 = vperm.xlu0 %798, %v738
    %v800 = vpop.permute.xlu0 %799
    %801 = vset.pattern.permute.xlu0 0
    %802 = vperm.xlu0 %801, %v740
    %v803 = vpop.permute.xlu0 %802
    %804 = vset.pattern.permute.xlu0 0
    %805 = vperm.xlu0 %804, %v742
    %v806 = vpop.permute.xlu0 %805
    %v807 = vlaneseq
    %v808 = vshrl.u32 %v807, 7
    %v809 = vsub.s32 %v561, %v808
    %v810 = vrot.slane %v761, %v809
    %v811 = vlaneseq
    %v812 = vshrl.u32 %v811, 7
    %v813 = vsub.s32 %v566, %v812
    %v814 = vrot.slane %v764, %v813
    %v815 = vsel %vm571, %v814, %v810
    %v816 = vlaneseq
    %v817 = vshrl.u32 %v816, 7
    %v818 = vsub.s32 %v561, %v817
    %v819 = vrot.slane %v767, %v818
    %v820 = vlaneseq
    %v821 = vshrl.u32 %v820, 7
    %v822 = vsub.s32 %v566, %v821
    %v823 = vrot.slane %v770, %v822
    %v824 = vsel %vm571, %v823, %v819
    %v825 = vlaneseq
    %v826 = vshrl.u32 %v825, 7
    %v827 = vsub.s32 %v561, %v826
    %v828 = vrot.slane %v773, %v827
    %v829 = vlaneseq
    %v830 = vshrl.u32 %v829, 7
    %v831 = vsub.s32 %v566, %v830
    %v832 = vrot.slane %v776, %v831
    %v833 = vsel %vm571, %v832, %v828
    %v834 = vlaneseq
    %v835 = vshrl.u32 %v834, 7
    %v836 = vsub.s32 %v561, %v835
    %v837 = vrot.slane %v779, %v836
    %v838 = vlaneseq
    %v839 = vshrl.u32 %v838, 7
    %v840 = vsub.s32 %v566, %v839
    %v841 = vrot.slane %v782, %v840
    %v842 = vsel %vm571, %v841, %v837
    %v843 = vlaneseq
    %v844 = vshrl.u32 %v843, 7
    %v845 = vsub.s32 %v561, %v844
    %v846 = vrot.slane %v785, %v845
    %v847 = vlaneseq
    %v848 = vshrl.u32 %v847, 7
    %v849 = vsub.s32 %v566, %v848
    %v850 = vrot.slane %v788, %v849
    %v851 = vsel %vm571, %v850, %v846
    %v852 = vlaneseq
    %v853 = vshrl.u32 %v852, 7
    %v854 = vsub.s32 %v561, %v853
    %v855 = vrot.slane %v791, %v854
    %v856 = vlaneseq
    %v857 = vshrl.u32 %v856, 7
    %v858 = vsub.s32 %v566, %v857
    %v859 = vrot.slane %v794, %v858
    %v860 = vsel %vm571, %v859, %v855
    %v861 = vlaneseq
    %v862 = vshrl.u32 %v861, 7
    %v863 = vsub.s32 %v561, %v862
    %v864 = vrot.slane %v797, %v863
    %v865 = vlaneseq
    %v866 = vshrl.u32 %v865, 7
    %v867 = vsub.s32 %v566, %v866
    %v868 = vrot.slane %v800, %v867
    %v869 = vsel %vm571, %v868, %v864
    %v870 = vlaneseq
    %v871 = vshrl.u32 %v870, 7
    %v872 = vsub.s32 %v561, %v871
    %v873 = vrot.slane %v803, %v872
    %v874 = vlaneseq
    %v875 = vshrl.u32 %v874, 7
    %v876 = vsub.s32 %v566, %v875
    %v877 = vrot.slane %v806, %v876
    %v878 = vsel %vm571, %v877, %v873
    %v879 = vsel %vm636, %v824, %v815
    %v880 = vsel %vm638, %v833, %v879
    %v881 = vsel %vm640, %v842, %v880
    %v882 = vsel %vm642, %v851, %v881
    %v883 = vsel %vm644, %v860, %v882
    %v884 = vsel %vm646, %v869, %v883
    %v885 = vsel %vm648, %v878, %v884
    %v887 = vsel %vm495, %v885, 0.0
    %888 = vadd.xlane.f32.xlu0 %v887
    %v889 = vpop.xlane.xlu0 %888
    %v891 = vlaneseq
    %v892 = vshrl.u32 %v891, 7
    %v893 = vsub.s32 0, %v892
    %v894 = vrot.slane %v889, %v893
    %v895 = vlaneseq
    %v896 = vshrl.u32 %v895, 7
    %v897 = vsub.s32 1, %v896
    %v898 = vrot.slane %v889, %v897
    %v899 = vlaneseq
    %v900 = vshrl.u32 %v899, 7
    %v901 = vsub.s32 2, %v900
    %v902 = vrot.slane %v889, %v901
    %v903 = vlaneseq
    %v904 = vshrl.u32 %v903, 7
    %v905 = vsub.s32 3, %v904
    %v906 = vrot.slane %v889, %v905
    %v907 = vlaneseq
    %v908 = vshrl.u32 %v907, 7
    %v909 = vsub.s32 4, %v908
    %v910 = vrot.slane %v889, %v909
    %v911 = vlaneseq
    %v912 = vshrl.u32 %v911, 7
    %v913 = vsub.s32 5, %v912
    %v914 = vrot.slane %v889, %v913
    %v915 = vlaneseq
    %v916 = vshrl.u32 %v915, 7
    %v917 = vsub.s32 6, %v916
    %v918 = vrot.slane %v889, %v917
    %v919 = vlaneseq
    %v920 = vshrl.u32 %v919, 7
    %v921 = vsub.s32 7, %v920
    %v922 = vrot.slane %v889, %v921
    %v931 = vrcp.pop %v894
    %v932 = vmul.f32 %v712, %v931
    %v933 = vmul.f32 %v714, %v931
    %v934 = vrcp.pop %v898
    %v935 = vmul.f32 %v716, %v934
    %v936 = vmul.f32 %v718, %v934
    %v937 = vrcp.pop %v902
    %v938 = vmul.f32 %v720, %v937
    %v939 = vmul.f32 %v722, %v937
    %v940 = vrcp.pop %v906
    %v941 = vmul.f32 %v724, %v940
    %v942 = vmul.f32 %v726, %v940
    %v943 = vrcp.pop %v910
    %v944 = vmul.f32 %v728, %v943
    %v945 = vmul.f32 %v730, %v943
    %v946 = vrcp.pop %v914
    %v947 = vmul.f32 %v732, %v946
    %v948 = vmul.f32 %v734, %v946
    %v949 = vrcp.pop %v918
    %v950 = vmul.f32 %v736, %v949
    %v951 = vmul.f32 %v738, %v949
    %v952 = vrcp.pop %v922
    %v953 = vmul.f32 %v740, %v952
    %v954 = vmul.f32 %v742, %v952
    %956 = vset.pattern.permute.xlu0 0
    %957 = vperm.xlu0 %956, %v932
    %v958 = vpop.permute.xlu0 %957
    %961 = vset.pattern.permute.xlu0 0
    %962 = vperm.xlu0 %961, %v933
    %v963 = vpop.permute.xlu0 %962
    %966 = vset.pattern.permute.xlu0 0
    %967 = vperm.xlu0 %966, %v935
    %v968 = vpop.permute.xlu0 %967
    %971 = vset.pattern.permute.xlu0 0
    %972 = vperm.xlu0 %971, %v936
    %v973 = vpop.permute.xlu0 %972
    %976 = vset.pattern.permute.xlu0 0
    %977 = vperm.xlu0 %976, %v938
    %v978 = vpop.permute.xlu0 %977
    %981 = vset.pattern.permute.xlu0 0
    %982 = vperm.xlu0 %981, %v939
    %v983 = vpop.permute.xlu0 %982
    %986 = vset.pattern.permute.xlu0 0
    %987 = vperm.xlu0 %986, %v941
    %v988 = vpop.permute.xlu0 %987
    %991 = vset.pattern.permute.xlu0 0
    %992 = vperm.xlu0 %991, %v942
    %v993 = vpop.permute.xlu0 %992
    %996 = vset.pattern.permute.xlu0 0
    %997 = vperm.xlu0 %996, %v944
    %v998 = vpop.permute.xlu0 %997
    %1001 = vset.pattern.permute.xlu0 0
    %1002 = vperm.xlu0 %1001, %v945
    %v1003 = vpop.permute.xlu0 %1002
    %1006 = vset.pattern.permute.xlu0 0
    %1007 = vperm.xlu0 %1006, %v947
    %v1008 = vpop.permute.xlu0 %1007
    %1011 = vset.pattern.permute.xlu0 0
    %1012 = vperm.xlu0 %1011, %v948
    %v1013 = vpop.permute.xlu0 %1012
    %1016 = vset.pattern.permute.xlu0 0
    %1017 = vperm.xlu0 %1016, %v950
    %v1018 = vpop.permute.xlu0 %1017
    %1021 = vset.pattern.permute.xlu0 0
    %1022 = vperm.xlu0 %1021, %v951
    %v1023 = vpop.permute.xlu0 %1022
    %1026 = vset.pattern.permute.xlu0 0
    %1027 = vperm.xlu0 %1026, %v953
    %v1028 = vpop.permute.xlu0 %1027
    %1031 = vset.pattern.permute.xlu0 0
    %1032 = vperm.xlu0 %1031, %v954
    %v1033 = vpop.permute.xlu0 %1032
    %v1035 = vmul.f32 %v44, %v958
    %v1036 = vmul.f32 %v45, %v963
    %v1037 = vmul.f32 %v46, %v968
    %v1038 = vmul.f32 %v47, %v973
    %v1039 = vmul.f32 %v48, %v978
    %v1040 = vmul.f32 %v49, %v983
    %v1041 = vmul.f32 %v50, %v988
    %v1042 = vmul.f32 %v51, %v993
    %v1043 = vmul.f32 %v52, %v998
    %v1044 = vmul.f32 %v53, %v1003
    %v1045 = vmul.f32 %v54, %v1008
    %v1046 = vmul.f32 %v55, %v1013
    %v1047 = vmul.f32 %v56, %v1018
    %v1048 = vmul.f32 %v57, %v1023
    %v1049 = vmul.f32 %v58, %v1028
    %v1050 = vmul.f32 %v59, %v1033
    %v1051 = vsel %vm72, %v1035, 0.0
    %v1052 = vsel %vm72, %v1036, 0.0
    %v1053 = vadd.f32 %v1051, %v1052
    %v1054 = vrot.slane %v1053, 4
    %v1055 = vadd.f32 %v1053, %v1054
    %v1056 = vrot.slane %v1055, 2
    %v1057 = vadd.f32 %v1055, %v1056
    %v1058 = vrot.slane %v1057, 1
    %v1059 = vadd.f32 %v1057, %v1058
    %v1060 = vsel %vm72, %v1037, 0.0
    %v1061 = vsel %vm72, %v1038, 0.0
    %v1062 = vadd.f32 %v1060, %v1061
    %v1063 = vrot.slane %v1062, 4
    %v1064 = vadd.f32 %v1062, %v1063
    %v1065 = vrot.slane %v1064, 2
    %v1066 = vadd.f32 %v1064, %v1065
    %v1067 = vrot.slane %v1066, 1
    %v1068 = vadd.f32 %v1066, %v1067
    %v1069 = vsel %vm72, %v1039, 0.0
    %v1070 = vsel %vm72, %v1040, 0.0
    %v1071 = vadd.f32 %v1069, %v1070
    %v1072 = vrot.slane %v1071, 4
    %v1073 = vadd.f32 %v1071, %v1072
    %v1074 = vrot.slane %v1073, 2
    %v1075 = vadd.f32 %v1073, %v1074
    %v1076 = vrot.slane %v1075, 1
    %v1077 = vadd.f32 %v1075, %v1076
    %v1078 = vsel %vm72, %v1041, 0.0
    %v1079 = vsel %vm72, %v1042, 0.0
    %v1080 = vadd.f32 %v1078, %v1079
    %v1081 = vrot.slane %v1080, 4
    %v1082 = vadd.f32 %v1080, %v1081
    %v1083 = vrot.slane %v1082, 2
    %v1084 = vadd.f32 %v1082, %v1083
    %v1085 = vrot.slane %v1084, 1
    %v1086 = vadd.f32 %v1084, %v1085
    %v1087 = vsel %vm72, %v1043, 0.0
    %v1088 = vsel %vm72, %v1044, 0.0
    %v1089 = vadd.f32 %v1087, %v1088
    %v1090 = vrot.slane %v1089, 4
    %v1091 = vadd.f32 %v1089, %v1090
    %v1092 = vrot.slane %v1091, 2
    %v1093 = vadd.f32 %v1091, %v1092
    %v1094 = vrot.slane %v1093, 1
    %v1095 = vadd.f32 %v1093, %v1094
    %v1096 = vsel %vm72, %v1045, 0.0
    %v1097 = vsel %vm72, %v1046, 0.0
    %v1098 = vadd.f32 %v1096, %v1097
    %v1099 = vrot.slane %v1098, 4
    %v1100 = vadd.f32 %v1098, %v1099
    %v1101 = vrot.slane %v1100, 2
    %v1102 = vadd.f32 %v1100, %v1101
    %v1103 = vrot.slane %v1102, 1
    %v1104 = vadd.f32 %v1102, %v1103
    %v1105 = vsel %vm72, %v1047, 0.0
    %v1106 = vsel %vm72, %v1048, 0.0
    %v1107 = vadd.f32 %v1105, %v1106
    %v1108 = vrot.slane %v1107, 4
    %v1109 = vadd.f32 %v1107, %v1108
    %v1110 = vrot.slane %v1109, 2
    %v1111 = vadd.f32 %v1109, %v1110
    %v1112 = vrot.slane %v1111, 1
    %v1113 = vadd.f32 %v1111, %v1112
    %v1114 = vsel %vm72, %v1049, 0.0
    %v1115 = vsel %vm72, %v1050, 0.0
    %v1116 = vadd.f32 %v1114, %v1115
    %v1117 = vrot.slane %v1116, 4
    %v1118 = vadd.f32 %v1116, %v1117
    %v1119 = vrot.slane %v1118, 2
    %v1120 = vadd.f32 %v1118, %v1119
    %v1121 = vrot.slane %v1120, 1
    %v1122 = vadd.f32 %v1120, %v1121
    %v1131 = vsel %vm636, %v1068, %v1059
    %v1132 = vsel %vm638, %v1077, %v1131
    %v1133 = vsel %vm640, %v1086, %v1132
    %v1134 = vsel %vm642, %v1095, %v1133
    %v1135 = vsel %vm644, %v1104, %v1134
    %v1136 = vsel %vm646, %v1113, %v1135
    %v1137 = vsel %vm648, %v1122, %v1136
    %1139 = vst.msk [vmem:[#allocation5] sm:$0xff] %vm72, %v1137
    %v1140 = vlaneseq
    %v1141 = vshrl.u32 %v1140, 7
    %v1142 = vsub.s32 %v561, %v1141
    %v1143 = vrot.slane %v958, %v1142
    %v1144 = vlaneseq
    %v1145 = vshrl.u32 %v1144, 7
    %v1146 = vsub.s32 %v566, %v1145
    %v1147 = vrot.slane %v963, %v1146
    %v1148 = vsel %vm571, %v1147, %v1143
    %v1149 = vlaneseq
    %v1150 = vshrl.u32 %v1149, 7
    %v1151 = vsub.s32 %v561, %v1150
    %v1152 = vrot.slane %v968, %v1151
    %v1153 = vlaneseq
    %v1154 = vshrl.u32 %v1153, 7
    %v1155 = vsub.s32 %v566, %v1154
    %v1156 = vrot.slane %v973, %v1155
    %v1157 = vsel %vm571, %v1156, %v1152
    %v1158 = vlaneseq
    %v1159 = vshrl.u32 %v1158, 7
    %v1160 = vsub.s32 %v561, %v1159
    %v1161 = vrot.slane %v978, %v1160
    %v1162 = vlaneseq
    %v1163 = vshrl.u32 %v1162, 7
    %v1164 = vsub.s32 %v566, %v1163
    %v1165 = vrot.slane %v983, %v1164
    %v1166 = vsel %vm571, %v1165, %v1161
    %v1167 = vlaneseq
    %v1168 = vshrl.u32 %v1167, 7
    %v1169 = vsub.s32 %v561, %v1168
    %v1170 = vrot.slane %v988, %v1169
    %v1171 = vlaneseq
    %v1172 = vshrl.u32 %v1171, 7
    %v1173 = vsub.s32 %v566, %v1172
    %v1174 = vrot.slane %v993, %v1173
    %v1175 = vsel %vm571, %v1174, %v1170
    %v1176 = vlaneseq
    %v1177 = vshrl.u32 %v1176, 7
    %v1178 = vsub.s32 %v561, %v1177
    %v1179 = vrot.slane %v998, %v1178
    %v1180 = vlaneseq
    %v1181 = vshrl.u32 %v1180, 7
    %v1182 = vsub.s32 %v566, %v1181
    %v1183 = vrot.slane %v1003, %v1182
    %v1184 = vsel %vm571, %v1183, %v1179
    %v1185 = vlaneseq
    %v1186 = vshrl.u32 %v1185, 7
    %v1187 = vsub.s32 %v561, %v1186
    %v1188 = vrot.slane %v1008, %v1187
    %v1189 = vlaneseq
    %v1190 = vshrl.u32 %v1189, 7
    %v1191 = vsub.s32 %v566, %v1190
    %v1192 = vrot.slane %v1013, %v1191
    %v1193 = vsel %vm571, %v1192, %v1188
    %v1194 = vlaneseq
    %v1195 = vshrl.u32 %v1194, 7
    %v1196 = vsub.s32 %v561, %v1195
    %v1197 = vrot.slane %v1018, %v1196
    %v1198 = vlaneseq
    %v1199 = vshrl.u32 %v1198, 7
    %v1200 = vsub.s32 %v566, %v1199
    %v1201 = vrot.slane %v1023, %v1200
    %v1202 = vsel %vm571, %v1201, %v1197
    %v1203 = vlaneseq
    %v1204 = vshrl.u32 %v1203, 7
    %v1205 = vsub.s32 %v561, %v1204
    %v1206 = vrot.slane %v1028, %v1205
    %v1207 = vlaneseq
    %v1208 = vshrl.u32 %v1207, 7
    %v1209 = vsub.s32 %v566, %v1208
    %v1210 = vrot.slane %v1033, %v1209
    %v1211 = vsel %vm571, %v1210, %v1206
    %v1212 = vsel %vm636, %v1157, %v1148
    %v1213 = vsel %vm638, %v1166, %v1212
    %v1214 = vsel %vm640, %v1175, %v1213
    %v1215 = vsel %vm642, %v1184, %v1214
    %v1216 = vsel %vm644, %v1193, %v1215
    %v1217 = vsel %vm646, %v1202, %v1216
    %v1218 = vsel %vm648, %v1211, %v1217
    %1220 = vst.msk [vmem:[#allocation6] sm:$0xff] %vm495, %v1218
    // Predicated region
    $region34: #{tpu_custom_call.1} parent=1 // pred_check
      _
    $region35: #{tpu_custom_call.1} parent=1 // pred_check_branch
      %1222 = sbr.rel (0) target = $region37
    $region36: #{tpu_custom_call.1} parent=1 // pred_region
      %s1224 = ssub.s32 128, 128
      %1225 = vsyncadd [#allocation4], %s1224
      %s1227 = sshll.u32 [#allocation5], 4
      %s1228 = int_to_ptr.vmem [resolvable:$true] %s1227
      %1230 = dma.vmem_to_hbm [thread:$0]  %s1228, 128, %s7, [#allocation4]
    $region37: #{tpu_custom_call.1} parent=1 // pred_fallthru
      _
    // Predicated region
    $region38: #{tpu_custom_call.1} parent=1 // pred_check
      _
    $region39: #{tpu_custom_call.1} parent=1 // pred_check_branch
      %1232 = sbr.rel (0) target = $region41
    $region40: #{tpu_custom_call.1} parent=1 // pred_region
      %s1234 = ssub.s32 128, 128
      %1235 = vsyncadd [#allocation7], %s1234
      %s1237 = sshll.u32 [#allocation6], 4
      %s1238 = int_to_ptr.vmem [resolvable:$true] %s1237
      %1240 = dma.vmem_to_hbm [thread:$0]  %s1238, 128, %s8, [#allocation7]
    $region41: #{tpu_custom_call.1} parent=1 // pred_fallthru
      _
    // Predicated region
    $region42: #{tpu_custom_call.1} parent=1 // pred_check
      _
    $region43: #{tpu_custom_call.1} parent=1 // pred_check_branch
      %1242 = sbr.rel (0) target = $region45
    $region44: #{tpu_custom_call.1} parent=1 // pred_region
      %1243 = dma.done [#allocation4], 128
    $region45: #{tpu_custom_call.1} parent=1 // pred_fallthru
      _
    // Predicated region
    $region46: #{tpu_custom_call.1} parent=1 // pred_check
      _
    $region47: #{tpu_custom_call.1} parent=1 // pred_check_branch
      %1245 = sbr.rel (0) target = $region49
    $region48: #{tpu_custom_call.1} parent=1 // pred_region
      %1246 = dma.done [#allocation7], 128
    $region49: #{tpu_custom_call.1} parent=1 // pred_fallthru
      _
    %1247 = vsyncpa [#allocation3], 1
    %1248 = vsyncpa [#allocation4], 1
    %1249 = vsyncpa [#allocation7], 1

</llo_original>
